<compile_context>
chip_gen: v7x
topology: tpu7x:2x2x1
jax: 0.10.0
libtpu: 0.0.40
codegen_flags: <defaults>
</compile_context>

<pallas_src>
import functools

import jax
import jax.numpy as jnp
from jax.experimental import pallas as pl
from jax.experimental.pallas import tpu as pltpu


def _round_up(v, m):
    return ((v + m - 1) // m) * m


def time2vec_kernel(x_ref, ws_ref, b_ref, lin_ref, o_ref):
    """One row tile.

    x_ref   : (tile_n, D)      input rows
    ws_ref  : (D, D*E)         block-diagonal weight (folds diag_embed @ W)
    b_ref   : (1, D*E)         flattened bias
    lin_ref : (1, D*E)         1.0 where the column stays linear (j == 0), else 0.0
    o_ref   : (tile_n, D*E)    lane-dense output tile
    """
    # Single MXU matmul with full output-lane utilization; reproduces
    # diag_embed(x) @ W exactly because WS is block-diagonal.
    aff = jnp.dot(x_ref[...], ws_ref[...], preferred_element_type=jnp.float32)
    aff = aff + b_ref[...]                      # VPU broadcast add (bias resident)
    periodic = jnp.sin(aff)                     # EUP transcendental slot
    out = jnp.where(lin_ref[...] > 0.0, aff, periodic)
    o_ref[...] = out.astype(o_ref.dtype)


def time2vec_forward(x, embed_weight, embed_bias):
    """x: (B, T, D) float32 -> (B, T, D*E) float32, matching Time2Vec.forward."""
    if embed_weight is None or embed_weight.size == 0:
        return x  # enabled == False path (embed_dim == 0)

    B, T, D = x.shape
    Dw, E = embed_weight.shape
    assert Dw == D, (Dw, D)
    DE = D * E
    N = B * T

    x2d = x.reshape(N, D).astype(jnp.float32)

    # Fold diag_embed(x) @ W into a single (D, D*E) block-diagonal weight.
    eye = jnp.eye(D, dtype=jnp.float32)
    ws = (eye[:, :, None] * embed_weight.astype(jnp.float32)[None, :, :]).reshape(D, DE)
    b_flat = embed_bias.astype(jnp.float32).reshape(1, DE)
    # 1.0 for the "linear" (j == 0) column of every input feature, 0.0 elsewhere.
    lin_mask = jnp.zeros((D, E), jnp.float32).at[:, 0].set(1.0).reshape(1, DE)

    # ---- Row-tile selection (biggest tile that comfortably fits VMEM). ----
    bytes_per_row = 4 * (D + DE)                      # x row + out row, f32
    max_tile = max(8, ((8 * 1024 * 1024) // max(bytes_per_row, 1)) // 8 * 8)
    tile_n = min(512, _round_up(N, 8), max_tile)
    n_pad = _round_up(N, tile_n)
    if n_pad != N:
        x2d = jnp.pad(x2d, ((0, n_pad - N), (0, 0)))  # padded rows are sliced off below
    grid = (n_pad // tile_n,)

    # Explicit VMEM budget: double-buffered in/out tiles + resident constants + headroom.
    tile_bytes = tile_n * bytes_per_row
    fixed_bytes = 4 * (D * DE + 2 * DE)
    vmem_limit = min(max(4 * tile_bytes + 2 * fixed_bytes + (2 << 20), 4 << 20), 64 << 20)

    cost = pl.CostEstimate(
        flops=2 * N * D * DE + 2 * N * DE,
        transcendentals=N * D * (E - 1),
        bytes_accessed=4 * (N * D + N * DE + D * DE + 2 * DE),
    )

    out2d = pl.pallas_call(
        time2vec_kernel,
        out_shape=jax.ShapeDtypeStruct((n_pad, DE), jnp.float32),
        grid=grid,
        in_specs=[
            pl.BlockSpec((tile_n, D), lambda i: (i, 0)),   # streamed row tiles
            pl.BlockSpec((D, DE), lambda i: (0, 0)),       # resident weight
            pl.BlockSpec((1, DE), lambda i: (0, 0)),       # resident bias
            pl.BlockSpec((1, DE), lambda i: (0, 0)),       # resident linear mask
        ],
        out_specs=pl.BlockSpec((tile_n, DE), lambda i: (i, 0)),
        compiler_params=pltpu.CompilerParams(
            dimension_semantics=("parallel",),
            vmem_limit_bytes=vmem_limit,
        ),
        cost_estimate=cost,
    )(x2d, ws, b_flat, lin_mask)

    return out2d[:N].reshape(B, T, DE)


def _reference_forward(x, embed_weight, embed_bias):
    """Pure-JAX transliteration of Time2Vec.forward for correctness checking."""
    B, T, D = x.shape
    E = embed_weight.shape[1]
    x_diag = x[..., :, None] * jnp.eye(D, dtype=x.dtype)          # torch.diag_embed
    aff = jnp.matmul(x_diag, embed_weight) + embed_bias           # (B, T, D, E)
    out = jnp.concatenate([aff[..., :1], jnp.sin(aff[..., 1:])], axis=-1)
    return out.reshape(B, T, D * E)


if __name__ == "__main__":
    # Small shapes consistent with the module: embed_dim % input_dim == 0.
    batch, time_step, input_dim, embed_dim = 2, 8, 4, 128
    E = embed_dim // input_dim  # per-feature embedding width (32)

    key = jax.random.PRNGKey(0)
    kx, kw, kb = jax.random.split(key, 3)
    x = jax.random.normal(kx, (batch, time_step, input_dim), jnp.float32)
    embed_weight = jax.random.normal(kw, (input_dim, E), jnp.float32)
    embed_bias = jax.random.normal(kb, (input_dim, E), jnp.float32)

    out = time2vec_forward(x, embed_weight, embed_bias)
    out = jax.block_until_ready(out)

    ref = _reference_forward(x, embed_weight, embed_bias)
    assert out.shape == (batch, time_step, embed_dim), out.shape
    assert jnp.allclose(out, ref, atol=1e-5, rtol=1e-5), "mismatch vs JAX reference"

    # TODO(synk): act_function is hard-wired to sin; arbitrary Python callables from
    # the Time2Vec constructor are not lowered generically.
    print("KERNEL_OK")
</pallas_src>

<mosaic_0001>
module attributes {stable_mosaic.version = 11 : i64} {
  func.func @time2vec_kernel(%arg0: i32, %arg1: memref<16x4xf32, #tpu.memory_space<vmem>>, %arg2: memref<4x128xf32, #tpu.memory_space<vmem>>, %arg3: memref<1x128xf32, #tpu.memory_space<vmem>>, %arg4: memref<1x128xf32, #tpu.memory_space<vmem>>, %arg5: memref<16x128xf32, #tpu.memory_space<vmem>>) attributes {dimension_semantics = [#tpu.dimension_semantics<parallel>], iteration_bounds = array<i64: 1>, scalar_prefetch = 0 : i64, scratch_operands = 0 : i64, tpu.core_type = #tpu.core_type<tc>, window_params = [{transform_indices = @transform_0, window_bounds = array<i64: 16, 4>}, {pipeline_mode = #tpu.pipeline_mode<synchronous>, transform_indices = @transform_1, window_bounds = array<i64: 4, 128>}, {pipeline_mode = #tpu.pipeline_mode<synchronous>, transform_indices = @transform_2, window_bounds = array<i64: 1, 128>}, {pipeline_mode = #tpu.pipeline_mode<synchronous>, transform_indices = @transform_3, window_bounds = array<i64: 1, 128>}, {transform_indices = @transform_4, window_bounds = array<i64: 16, 128>}]} {
    %c0 = arith.constant 0 : index
    %c0_0 = arith.constant 0 : index
    %0 = vector.load %arg1[%c0, %c0_0] : memref<16x4xf32, #tpu.memory_space<vmem>>, vector<16x4xf32>
    %c0_1 = arith.constant 0 : index
    %c0_2 = arith.constant 0 : index
    %1 = vector.load %arg2[%c0_1, %c0_2] : memref<4x128xf32, #tpu.memory_space<vmem>>, vector<4x128xf32>
    %cst = arith.constant dense<0.000000e+00> : vector<16x128xf32>
    %2 = tpu.matmul %0, %1, %cst {dimension_numbers = #tpu.dot_dimension_numbers<[1], [0], [0], [1], [0, 0, 1, 1], [], []>} : vector<16x4xf32>, vector<4x128xf32>, vector<16x128xf32> -> vector<16x128xf32>
    %c0_3 = arith.constant 0 : index
    %c0_4 = arith.constant 0 : index
    %3 = vector.load %arg3[%c0_3, %c0_4] : memref<1x128xf32, #tpu.memory_space<vmem>>, vector<1x128xf32>
    %4 = vector.broadcast %3 : vector<1x128xf32> to vector<16x128xf32>
    %5 = arith.addf %2, %4 : vector<16x128xf32>
    %6 = math.sin %5 : vector<16x128xf32>
    %c0_5 = arith.constant 0 : index
    %c0_6 = arith.constant 0 : index
    %7 = vector.load %arg4[%c0_5, %c0_6] : memref<1x128xf32, #tpu.memory_space<vmem>>, vector<1x128xf32>
    %cst_7 = arith.constant 0.000000e+00 : f32
    %8 = vector.broadcast %cst_7 : f32 to vector<1x128xf32>
    %9 = arith.cmpf ogt, %7, %8 : vector<1x128xf32>
    %10 = vector.shape_cast %9 : vector<1x128xi1> to vector<1x128xi1>
    %11 = vector.broadcast %10 : vector<1x128xi1> to vector<16x128xi1>
    %12 = arith.select %11, %5, %6 : vector<16x128xi1>, vector<16x128xf32>
    %c0_8 = arith.constant 0 : index
    %c0_9 = arith.constant 0 : index
    %13 = vector.load %arg5[%c0_8, %c0_9] : memref<16x128xf32, #tpu.memory_space<vmem>>, vector<16x128xf32>
    tpu.vector_store %arg5[%c0_8, %c0_9], %12 {strides = array<i32>} : memref<16x128xf32, #tpu.memory_space<vmem>>, vector<16x128xf32>,
    return
  }
  func.func @transform_0(%arg0: i32) -> (i32, i32) {
    %c0_i32 = arith.constant 0 : i32
    %c0_i32_0 = arith.constant 0 : i32
    return %arg0, %c0_i32 : i32, i32
  }
  func.func @transform_1(%arg0: i32) -> (i32, i32) {
    %c0_i32 = arith.constant 0 : i32
    %c0_i32_0 = arith.constant 0 : i32
    %c0_i32_1 = arith.constant 0 : i32
    return %c0_i32, %c0_i32_0 : i32, i32
  }
  func.func @transform_2(%arg0: i32) -> (i32, i32) {
    %c0_i32 = arith.constant 0 : i32
    %c0_i32_0 = arith.constant 0 : i32
    %c0_i32_1 = arith.constant 0 : i32
    return %c0_i32, %c0_i32_0 : i32, i32
  }
  func.func @transform_3(%arg0: i32) -> (i32, i32) {
    %c0_i32 = arith.constant 0 : i32
    %c0_i32_0 = arith.constant 0 : i32
    %c0_i32_1 = arith.constant 0 : i32
    return %c0_i32, %c0_i32_0 : i32, i32
  }
  func.func @transform_4(%arg0: i32) -> (i32, i32) {
    %c0_i32 = arith.constant 0 : i32
    %c0_i32_0 = arith.constant 0 : i32
    return %arg0, %c0_i32 : i32, i32
  }
}

</mosaic_0001>

<llo_original>
// kernel: tpu_custom_call.1
$region0: #{tpu_custom_call.1}
  #allocation0 [shape = 'u32[]', space=smem, size = 0x4, offset = 0x4, fixed_abs, tag = 'smem constant byte address 0x4 - core index']
  #allocation1 [shape = 'u32[144,128]{1,0:T(1,128)}', space=vmem, size = 0x12000, scoped, tag = 'internal scratch']
  %s0 = inlined_call_operand.vmem [shape: f32[16,4], index: 0, kind: input, shape index: {}]
  %s1 = inlined_call_operand.vmem [shape: f32[4,128], index: 1, kind: input, shape index: {}]
  %s2 = inlined_call_operand.vmem [shape: f32[1,128], index: 2, kind: input, shape index: {}]
  %s3 = inlined_call_operand.vmem [shape: f32[1,128], index: 3, kind: input, shape index: {}]
  %s4 = inlined_call_operand.hbm [shape: f32[16,128], index: 4, kind: output, shape index: {}]
  %s5 = sld [smem:[#allocation0]]
  $region26: #{tpu_custom_call.1} parent=0
    _
  %s7 = ssub.s32 1, %s5
  %s8 = scalar_select 0, %s7, %s5
  $region1: #{tpu_custom_call.1} parent=0
    #allocation2 [shape = 'u8[8192]{0}', space=vmem, size = 0x2000, scoped, tag = 'output window, operand 0, single buffered']
    #allocation3 [shape = 's32[1]{0}', space=sflag, size = 0x4, scoped, tag = 'scoped memory for tpu_custom_call.1']
    %9 = vsyncpa [#allocation3], 0
    // Predicated region
    $region2: #{tpu_custom_call.1} parent=1 // pred_check
      _
    $region3: #{tpu_custom_call.1} parent=1 // pred_check_branch
      %11 = sbr.rel (0) target = $region5
    $region4: #{tpu_custom_call.1} parent=1 // pred_region
      _
    $region5: #{tpu_custom_call.1} parent=1 // pred_fallthru
      _
    // Predicated region
    $region6: #{tpu_custom_call.1} parent=1 // pred_check
      _
    $region7: #{tpu_custom_call.1} parent=1 // pred_check_branch
      %13 = sbr.rel (0) target = $region9
    $region8: #{tpu_custom_call.1} parent=1 // pred_region
      _
    $region9: #{tpu_custom_call.1} parent=1 // pred_fallthru
      _
    // Predicated region
    $region10: #{tpu_custom_call.1} parent=1 // pred_check
      _
    $region11: #{tpu_custom_call.1} parent=1 // pred_check_branch
      %15 = sbr.rel (0) target = $region13
    $region12: #{tpu_custom_call.1} parent=1 // pred_region
      _
    $region13: #{tpu_custom_call.1} parent=1 // pred_fallthru
      _
    // Predicated region
    $region14: #{tpu_custom_call.1} parent=1 // pred_check
      _
    $region15: #{tpu_custom_call.1} parent=1 // pred_check_branch
      %17 = sbr.rel (0) target = $region17
    $region16: #{tpu_custom_call.1} parent=1 // pred_region
      _
    $region17: #{tpu_custom_call.1} parent=1 // pred_fallthru
      _
    %v18 = vld [vmem:[%s0] sm:$0xff]
    %v19 = vld [vmem:[%s0 + $0x8] sm:$0xff]
    %v20 = vld [vmem:[%s1] sm:$0xf]
    %v21 = vld [vmem:[%s2] sm:$0x1]
    %v23 = vlaneseq
    %v24 = vshrl.u32 %v23, 7
    %v25 = vsub.s32 0, %v24
    %v26 = vrot.slane %v21, %v25
    %vm28 = vcmask 31744
    %v30 = vsel %vm28, %v18, 0
    %v33 = vsel %vm28, %v19, 0
    %vm35 = vcmask 1043456
    %v37 = vsel %vm35, %v20, 0
    %39 = vmatprep.subr.mxu0 0.0
    %40 = vmatpush1.msra.mxu0 %v37
    %41 = vmatprep.subr.mxu0 0.0
    %42 = vmatpush1.msra.mxu0 0.0
    %43 = vmatprep.subr.mxu0 0.0
    %44 = vmatpush1.msra.mxu0 0.0
    %45 = vmatprep.subr.mxu0 0.0
    %46 = vmatpush1.msra.mxu0 0.0
    %47 = vmatprep.subr.mxu0 0.0
    %48 = vmatpush1.msra.mxu0 0.0
    %49 = vmatprep.subr.mxu0 0.0
    %50 = vmatpush1.msra.mxu0 0.0
    %51 = vmatprep.subr.mxu0 0.0
    %52 = vmatpush1.msra.mxu0 0.0
    %53 = vmatprep.subr.mxu0 0.0
    %54 = vmatpush1.msra.mxu0 0.0
    %55 = vmatprep.subr.mxu0 0.0
    %56 = vmatpush1.msra.mxu0 0.0
    %57 = vmatprep.subr.mxu0 0.0
    %58 = vmatpush1.msra.mxu0 0.0
    %59 = vmatprep.subr.mxu0 0.0
    %60 = vmatpush1.msra.mxu0 0.0
    %61 = vmatprep.subr.mxu0 0.0
    %62 = vmatpush1.msra.mxu0 0.0
    %63 = vmatprep.subr.mxu0 0.0
    %64 = vmatpush1.msra.mxu0 0.0
    %65 = vmatprep.subr.mxu0 0.0
    %66 = vmatpush1.msra.mxu0 0.0
    %67 = vmatprep.subr.mxu0 0.0
    %68 = vmatpush1.msra.mxu0 0.0
    %69 = vmatprep.subr.mxu0 0.0
    %70 = vmatpush1.msra.mxu0 0.0
    %71 = vmatprep.subr.mxu0 0.0
    %72 = vmatpush1.msra.mxu0 0.0
    %73 = vmatprep.subr.mxu0 0.0
    %74 = vmatpush1.msra.mxu0 0.0
    %75 = vmatprep.subr.mxu0 0.0
    %76 = vmatpush1.msra.mxu0 0.0
    %77 = vmatprep.subr.mxu0 0.0
    %78 = vmatpush1.msra.mxu0 0.0
    %79 = vmatprep.subr.mxu0 0.0
    %80 = vmatpush1.msra.mxu0 0.0
    %81 = vmatprep.subr.mxu0 0.0
    %82 = vmatpush1.msra.mxu0 0.0
    %83 = vmatprep.subr.mxu0 0.0
    %84 = vmatpush1.msra.mxu0 0.0
    %85 = vmatprep.subr.mxu0 0.0
    %86 = vmatpush1.msra.mxu0 0.0
    %87 = vmatprep.subr.mxu0 0.0
    %88 = vmatpush1.msra.mxu0 0.0
    %89 = vmatprep.subr.mxu0 0.0
    %90 = vmatpush1.msra.mxu0 0.0
    %91 = vmatprep.subr.mxu0 0.0
    %92 = vmatpush1.msra.mxu0 0.0
    %93 = vmatprep.subr.mxu0 0.0
    %94 = vmatpush1.msra.mxu0 0.0
    %95 = vmatprep.subr.mxu0 0.0
    %96 = vmatpush1.msra.mxu0 0.0
    %97 = vmatprep.subr.mxu0 0.0
    %98 = vmatpush1.msra.mxu0 0.0
    %99 = vmatprep.subr.mxu0 0.0
    %100 = vmatpush1.msra.mxu0 0.0
    %101 = vmatprep.subr.mxu0 0.0
    %102 = vmatpush1.msra.mxu0 0.0
    %103 = vmatprep.mubr.f32.mxu0 0.0
    %104 = vmatmul.mubr.f32.gmra.mrb[0].mxu0 %v30
    %v105 = vpop.f32.mrb[0].mxu0
    %v106 = vadd.f32 %v26, %v105
    %v107 = vpop.f32.mrb[0].mxu0
    %108 = vmatprep.mubr.f32.mxu0 0.0
    %109 = vmatmul.mubr.f32.gmra.mrb[0].mxu0 %v33
    %v110 = vpop.f32.mrb[0].mxu0
    %v111 = vadd.f32 %v26, %v110
    %v112 = vpop.f32.mrb[0].mxu0
    %113 = vdwg.mxu0
    %v114 = vand.u32 2147483647, %v106
    %vm115 = vcmp.le.f32.partialorder %v114, 0.7853982
    %vm116 = vcmp.lt.s32.totalorder %v106, 0
    %v117 = vand.u32 %v106, 2139095040
    %v118 = vshrl.u32 %v117, 23
    %v119 = vsub.s32 %v118, 127
    %v120 = vand.u32 2147483647, %v106
    %v121 = vand.u32 %v120, 8388607
    %v122 = vor.u32 %v121, 8388608
    %v123 = vsub.s32 0, %v122
    %v124 = vadd.s32 %v119, 1
    %vm125 = vcmp.gt.s32.totalorder %v124, 0
    %v126 = vsel %vm125, %v124, 0
    %v127 = vshrl.u32 %v126, 5
    %v128 = vand.u32 %v126, 31
    %v129 = vsub.s32 32, %v128
    %v130 = vshrl.u32 683565275, %v129
    %v131 = vshll.u32 683565275, %v128
    %v132 = vshrl.u32 2475754826, %v129
    %v133 = vor.u32 %v131, %v132
    %v134 = vshll.u32 2475754826, %v128
    %v135 = vshrl.u32 2131351028, %v129
    %v136 = vor.u32 %v134, %v135
    %v137 = vshll.u32 2131351028, %v128
    %v138 = vshrl.u32 2102212464, %v129
    %v139 = vor.u32 %v137, %v138
    %v140 = vshll.u32 2102212464, %v128
    %v141 = vshrl.u32 920167782, %v129
    %v142 = vor.u32 %v140, %v141
    %v143 = vshll.u32 920167782, %v128
    %v144 = vshrl.u32 1326507024, %v129
    %v145 = vor.u32 %v143, %v144
    %vm146 = vcmp.lt.s32.totalorder %v127, 1
    %vm147 = vcmp.lt.s32.totalorder %v127, 2
    %vm148 = vcmp.lt.s32.totalorder %v127, 3
    %vm149 = vcmp.lt.s32.totalorder %v127, 4
    %v150 = vsel %vm146, %v130, %v133
    %v151 = vsel %vm149, %v139, 2102212464
    %v152 = vsel %vm148, %v136, %v151
    %v153 = vsel %vm147, %v150, %v152
    %v154 = vsel %vm146, %v133, %v136
    %v155 = vsel %vm149, %v142, 920167782
    %v156 = vsel %vm148, %v139, %v155
    %v157 = vsel %vm147, %v154, %v156
    %v158 = vsel %vm146, %v136, %v139
    %v159 = vsel %vm149, %v145, 1326507024
    %v160 = vsel %vm148, %v142, %v159
    %v161 = vsel %vm147, %v158, %v160
    %v162 = vshll.u32 %v122, 8
    %v163 = vmul.u32.u64.compose %v162, %v161
    %v164 = vextract.low.u32 %v163
    %v165 = vextract.high.u32 %v163
    %v166 = vmul.u32.u64.compose %v162, %v157
    %v167 = vextract.low.u32 %v166
    %v168 = vextract.high.u32 %v166
    %v169 = vmul.u32 %v162, %v153
    %v170 = vadd.s32 %v165, %v167
    %vm171 = vc.u32 %v165, %v167
    %v172 = vadd.s32 %v168, 1
    %v173 = vsel %vm171, %v172, %v168
    %v174 = vadd.s32 %v169, %v173
    %v175 = vadd.s32 %v174, 536870912
    %v176 = vshrl.u32 %v175, 30
    %v177 = vshll.u32 %v176, 30
    %v178 = vsub.s32 %v174, %v177
    %vm179 = vcmp.lt.s32.totalorder %v178, 0
    %v180 = vsub.s32 0, %v178
    %v181 = vsel %vm179, %v180, %v178
    %v182 = vclz %v181
    %v183 = vsub.s32 %v182, 2
    %vm184 = vcmp.gt.s32.totalorder 0, %v183
    %v185 = vsel %vm184, 0, %v183
    %v186 = vsub.s32 32, %v185
    %v187 = vshll.u32 %v178, %v185
    %v188 = vshrl.u32 %v170, %v186
    %v189 = vor.u32 %v187, %v188
    %v190 = vsub.s32 4294967266, %v185
    %v191 = vadd.s32 %v190, 127
    %v192 = vshll.u32 %v191, 23
    %v193 = vor.u32 4788187, %v192
    %v194 = vand.u32 2147483647, %v193
    %v196 = vcvt.s32.f32 %v189
    %v197 = vmul.f32 %v196, %v194
    %v198 = vxor.u32 %v197, 2147483648
    %v199 = vsel %vm116, %v198, %v197
    %v200 = vsub.s32 4, %v176
    %v201 = vsel %vm116, %v200, %v176
    %v202 = vsel %vm115, %v106, %v199
    %v203 = vsel %vm115, 0, %v201
    %v204 = vcosq.f32.pop %v202
    %v205 = vsinq.f32.pop %v202
    %vm206 = vweird.f32 %v106
    %v207 = vadd.s32 %v203, 3
    %v208 = vand.u32 %v207, 3
    %vm209 = vcmp.lt.s32.totalorder %v208, 2
    %vm210 = vcmp.eq.s32.totalorder %v208, 0
    %v211 = vxor.u32 %v205, 2147483648
    %v212 = vsel %vm210, %v204, %v211
    %vm213 = vcmp.eq.s32.totalorder %v208, 2
    %v214 = vxor.u32 %v204, 2147483648
    %v215 = vsel %vm213, %v214, %v205
    %v216 = vsel %vm209, %v212, %v215
    %v217 = vsel %vm206, nan, %v216
    %v218 = vand.u32 2147483647, %v111
    %vm219 = vcmp.le.f32.partialorder %v218, 0.7853982
    %vm220 = vcmp.lt.s32.totalorder %v111, 0
    %v221 = vand.u32 %v111, 2139095040
    %v222 = vshrl.u32 %v221, 23
    %v223 = vsub.s32 %v222, 127
    %v224 = vand.u32 2147483647, %v111
    %v225 = vand.u32 %v224, 8388607
    %v226 = vor.u32 %v225, 8388608
    %v227 = vsub.s32 0, %v226
    %v228 = vadd.s32 %v223, 1
    %vm229 = vcmp.gt.s32.totalorder %v228, 0
    %v230 = vsel %vm229, %v228, 0
    %v231 = vshrl.u32 %v230, 5
    %v232 = vand.u32 %v230, 31
    %v233 = vsub.s32 32, %v232
    %v234 = vshrl.u32 683565275, %v233
    %v235 = vshll.u32 683565275, %v232
    %v236 = vshrl.u32 2475754826, %v233
    %v237 = vor.u32 %v235, %v236
    %v238 = vshll.u32 2475754826, %v232
    %v239 = vshrl.u32 2131351028, %v233
    %v240 = vor.u32 %v238, %v239
    %v241 = vshll.u32 2131351028, %v232
    %v242 = vshrl.u32 2102212464, %v233
    %v243 = vor.u32 %v241, %v242
    %v244 = vshll.u32 2102212464, %v232
    %v245 = vshrl.u32 920167782, %v233
    %v246 = vor.u32 %v244, %v245
    %v247 = vshll.u32 920167782, %v232
    %v248 = vshrl.u32 1326507024, %v233
    %v249 = vor.u32 %v247, %v248
    %vm250 = vcmp.lt.s32.totalorder %v231, 1
    %vm251 = vcmp.lt.s32.totalorder %v231, 2
    %vm252 = vcmp.lt.s32.totalorder %v231, 3
    %vm253 = vcmp.lt.s32.totalorder %v231, 4
    %v254 = vsel %vm250, %v234, %v237
    %v255 = vsel %vm253, %v243, 2102212464
    %v256 = vsel %vm252, %v240, %v255
    %v257 = vsel %vm251, %v254, %v256
    %v258 = vsel %vm250, %v237, %v240
    %v259 = vsel %vm253, %v246, 920167782
    %v260 = vsel %vm252, %v243, %v259
    %v261 = vsel %vm251, %v258, %v260
    %v262 = vsel %vm250, %v240, %v243
    %v263 = vsel %vm253, %v249, 1326507024
    %v264 = vsel %vm252, %v246, %v263
    %v265 = vsel %vm251, %v262, %v264
    %v266 = vshll.u32 %v226, 8
    %v267 = vmul.u32.u64.compose %v266, %v265
    %v268 = vextract.low.u32 %v267
    %v269 = vextract.high.u32 %v267
    %v270 = vmul.u32.u64.compose %v266, %v261
    %v271 = vextract.low.u32 %v270
    %v272 = vextract.high.u32 %v270
    %v273 = vmul.u32 %v266, %v257
    %v274 = vadd.s32 %v269, %v271
    %vm275 = vc.u32 %v269, %v271
    %v276 = vadd.s32 %v272, 1
    %v277 = vsel %vm275, %v276, %v272
    %v278 = vadd.s32 %v273, %v277
    %v279 = vadd.s32 %v278, 536870912
    %v280 = vshrl.u32 %v279, 30
    %v281 = vshll.u32 %v280, 30
    %v282 = vsub.s32 %v278, %v281
    %vm283 = vcmp.lt.s32.totalorder %v282, 0
    %v284 = vsub.s32 0, %v282
    %v285 = vsel %vm283, %v284, %v282
    %v286 = vclz %v285
    %v287 = vsub.s32 %v286, 2
    %vm288 = vcmp.gt.s32.totalorder 0, %v287
    %v289 = vsel %vm288, 0, %v287
    %v290 = vsub.s32 32, %v289
    %v291 = vshll.u32 %v282, %v289
    %v292 = vshrl.u32 %v274, %v290
    %v293 = vor.u32 %v291, %v292
    %v294 = vsub.s32 4294967266, %v289
    %v295 = vadd.s32 %v294, 127
    %v296 = vshll.u32 %v295, 23
    %v297 = vor.u32 4788187, %v296
    %v298 = vand.u32 2147483647, %v297
    %v300 = vcvt.s32.f32 %v293
    %v301 = vmul.f32 %v300, %v298
    %v302 = vxor.u32 %v301, 2147483648
    %v303 = vsel %vm220, %v302, %v301
    %v304 = vsub.s32 4, %v280
    %v305 = vsel %vm220, %v304, %v280
    %v306 = vsel %vm219, %v111, %v303
    %v307 = vsel %vm219, 0, %v305
    %v308 = vcosq.f32.pop %v306
    %v309 = vsinq.f32.pop %v306
    %vm310 = vweird.f32 %v111
    %v311 = vadd.s32 %v307, 3
    %v312 = vand.u32 %v311, 3
    %vm313 = vcmp.lt.s32.totalorder %v312, 2
    %vm314 = vcmp.eq.s32.totalorder %v312, 0
    %v315 = vxor.u32 %v309, 2147483648
    %v316 = vsel %vm314, %v308, %v315
    %vm317 = vcmp.eq.s32.totalorder %v312, 2
    %v318 = vxor.u32 %v308, 2147483648
    %v319 = vsel %vm317, %v318, %v309
    %v320 = vsel %vm313, %v316, %v319
    %v321 = vsel %vm310, nan, %v320
    %v322 = vld [vmem:[%s3] sm:$0x1]
    %vm323 = vcmp.gt.f32.partialorder %v322, 0.0
    %v324 = vsel %vm323, 1, 0
    %v325 = vlaneseq
    %v326 = vshrl.u32 %v325, 7
    %v327 = vsub.s32 0, %v326
    %v328 = vrot.slane %v324, %v327
    %vm329 = vcmp.eq.s32.totalorder %v328, 1
    %v330 = vsel %vm329, %v106, %v217
    %v331 = vsel %vm329, %v111, %v321
    %332 = vst [vmem:[#allocation2] sm:$0xff] %v330
    %333 = vst [vmem:[#allocation2 + $0x8] sm:$0xff] %v331
    // Predicated region
    $region18: #{tpu_custom_call.1} parent=1 // pred_check
      _
    $region19: #{tpu_custom_call.1} parent=1 // pred_check_branch
      %335 = sbr.rel (0) target = $region21
    $region20: #{tpu_custom_call.1} parent=1 // pred_region
      %s337 = ssub.s32 256, 256
      %338 = vsyncadd [#allocation3], %s337
      %s339 = sshll.u32 [#allocation2], 4
      %s340 = int_to_ptr.vmem [resolvable:$true] %s339
      %345 = dma.vmem_to_hbm [thread:$0]  %s340, 256, %s4, [#allocation3], 128, 128, 8
    $region21: #{tpu_custom_call.1} parent=1 // pred_fallthru
      _
    // Predicated region
    $region22: #{tpu_custom_call.1} parent=1 // pred_check
      _
    $region23: #{tpu_custom_call.1} parent=1 // pred_check_branch
      %347 = sbr.rel (0) target = $region25
    $region24: #{tpu_custom_call.1} parent=1 // pred_region
      %348 = dma.done [#allocation3], 256
    $region25: #{tpu_custom_call.1} parent=1 // pred_fallthru
      _
    %349 = vsyncpa [#allocation3], 1

</llo_original>
